<compile_context>
chip_gen: v7x
topology: tpu7x:2x2x1
jax: 0.10.0
libtpu: 0.0.40
codegen_flags: <defaults>
</compile_context>

<pallas_src>
import functools
import math

import jax
import jax.numpy as jnp
from jax.experimental import pallas as pl
from jax.experimental.pallas import tpu as pltpu


def _ipow(x, n: int):
    """x ** n for integer n >= 1 via square-and-multiply (short VPU dep chain)."""
    result = None
    base = x
    while True:
        if n & 1:
            result = base if result is None else result * base
        n >>= 1
        if n == 0:
            return result
        base = base * base


def _edge_encoding_kernel(src_ref, trg_ref, o_ref, *, r_max: float, p: float,
                          num_basis: int):
    # src_ref / trg_ref : (4, R, 128) f32, rows = [x, y, z, class-bits]
    # o_ref             : (NB+1, R, 128) f32, rows = [basis_1..basis_NB, member]

    # --- class membership (hoisted; class rows die immediately) -------------
    same = (pltpu.bitcast(src_ref[3], jnp.int32)
            == pltpu.bitcast(trg_ref[3], jnp.int32))
    o_ref[num_basis] = same.astype(jnp.float32)

    # --- edge length ---------------------------------------------------------
    dx = trg_ref[0] - src_ref[0]
    dy = trg_ref[1] - src_ref[1]
    dz = trg_ref[2] - src_ref[2]
    r2 = dx * dx + dy * dy + dz * dz
    # One rsqrt per edge; clamp avoids inf/NaN on zero-length / padded edges.
    # (Divergence from PyTorch: reference yields Inf/NaN at r == 0, we yield 0.)
    inv_r = jax.lax.rsqrt(jnp.maximum(r2, 1e-24))
    r = r2 * inv_r

    # --- polynomial cutoff on x = r / r_max (Horner around x^p) -------------
    x = r * (1.0 / r_max)
    xp = _ipow(x, int(p))
    a = (p + 1.0) * (p + 2.0) / 2.0
    b = p * (p + 2.0)
    c = p * (p + 1.0) / 2.0
    cut = 1.0 + xp * (x * (b - c * x) - a)
    cut = jnp.where(x < 1.0, cut, 0.0)

    # (2/r_max) * 1/r * cutoff, folded into the recurrence's initial condition.
    scale = (2.0 / r_max) * inv_r * cut

    # --- Bessel basis: scale * sin(n*pi*r/r_max) via angle-addition recurrence
    #     (default non-trainable weights are exactly n*pi) -> 2 transcendentals
    #     per edge, ~3 live (R,128) rows in the loop, one dense store per row.
    theta = r * (math.pi / r_max)
    two_c = 2.0 * jnp.cos(theta)
    s_cur = jnp.sin(theta) * scale
    o_ref[0] = s_cur
    if num_basis > 1:
        s_next = two_c * s_cur                 # = scale * sin(2*theta)
        o_ref[1] = s_next
        s_prev, s_cur = s_cur, s_next
        for n in range(2, num_basis):
            s_next = two_c * s_cur - s_prev
            o_ref[n] = s_next
            s_prev, s_cur = s_cur, s_next


def radial_basis_class_edge_encoding(pos, node_class, src_index, trg_index, *,
                                     num_basis=8, r_max=4.0, p=6.0,
                                     tile_edges=16384):
    E = int(src_index.shape[0])
    NB = int(num_basis)
    LANES = 128
    MIN_TILE = 8 * LANES          # one (8, 128) register tile of edges

    def _rup(a, m):
        return ((a + m - 1) // m) * m

    # Tile sizing: as large as practical (amortizes ~0.35us/grid-step), but
    # capped so that E large enough still gets >= ~8 grid steps (>= 4 per
    # TensorCore on v7x) for pipelining across the "parallel" axis.
    tile = max(MIN_TILE, (int(tile_edges) // MIN_TILE) * MIN_TILE)
    tile = min(tile, max(MIN_TILE, _rup(pl.cdiv(E, 8), MIN_TILE)))
    e_pad = _rup(E, tile)
    grid = e_pad // tile
    tile_r = tile // LANES
    rows = e_pad // LANES

    # Packed node table (tiny): rows = [pos_x, pos_y, pos_z, class-bits] as f32.
    pos_f = pos.astype(jnp.float32)
    cls_bits = jax.lax.bitcast_convert_type(node_class.astype(jnp.int32),
                                            jnp.float32)
    node_tab = jnp.concatenate([pos_f.T, cls_bits[None, :]], axis=0)   # (4, N)

    # Pad ONLY the tiny int32 index vectors; the gathers then directly emit
    # padded, lane-dense (4, rows, 128) slabs -- no sublane padding, no extra
    # pad copy of the big per-edge arrays, one DMA stream per endpoint.
    def _edge_gather(idx):
        idx = idx.astype(jnp.int32)
        if e_pad != E:
            idx = jnp.pad(idx, (0, e_pad - E))
        return jnp.take(node_tab, idx.reshape(rows, LANES), axis=1)     # (4, rows, 128)

    src_tab = _edge_gather(src_index)
    trg_tab = _edge_gather(trg_index)

    kernel = functools.partial(_edge_encoding_kernel, r_max=float(r_max),
                               p=float(p), num_basis=NB)

    out3 = pl.pallas_call(
        kernel,
        out_shape=jax.ShapeDtypeStruct((NB + 1, rows, LANES), jnp.float32),
        grid=(grid,),
        in_specs=[
            pl.BlockSpec((4, tile_r, LANES), lambda i: (0, i, 0)),       # src slab
            pl.BlockSpec((4, tile_r, LANES), lambda i: (0, i, 0)),       # trg slab
        ],
        out_specs=pl.BlockSpec((NB + 1, tile_r, LANES), lambda i: (0, i, 0)),
        compiler_params=pltpu.CompilerParams(dimension_semantics=("parallel",)),
    )(src_tab, trg_tab)

    # Module semantics: edge-major [E, NB+1] (padded lanes are sliced off here;
    # they carry member=1 / garbage basis values and must not leak downstream).
    return out3.reshape(NB + 1, e_pad)[:, :E].T


def _reference(pos, node_class, src_index, trg_index, num_basis, r_max, p):
    w = (jnp.arange(1, num_basis + 1, dtype=jnp.float32) * math.pi)[None, :]  # (1, NB)
    vec = pos[trg_index] - pos[src_index]
    r = jnp.linalg.norm(vec, axis=-1, keepdims=True)                          # (E, 1)
    bessel = (2.0 / r_max) * jnp.sin(w * r / r_max) / r                       # (E, NB)
    x = r / r_max
    cut = (1.0
           - ((p + 1.0) * (p + 2.0) / 2.0) * x ** p
           + (p * (p + 2.0)) * x ** (p + 1.0)
           - (p * (p + 1.0) / 2.0) * x ** (p + 2.0))
    cut = cut * (x < 1.0).astype(jnp.float32)
    emb = bessel * cut
    member = (node_class[src_index] == node_class[trg_index]
              ).astype(jnp.float32)[:, None]
    return jnp.concatenate([emb, member], axis=1)


if __name__ == "__main__":
    key = jax.random.PRNGKey(0)
    k_pos, k_cls, k_src, k_off = jax.random.split(key, 4)

    num_nodes = 12
    num_edges = 200        # deliberately NOT a multiple of the tile: exercises padding
    num_basis = 8          # BesselBasis default
    r_max = 4.0
    p = 6.0

    pos = jax.random.uniform(k_pos, (num_nodes, 3), jnp.float32, 0.0, 3.0)
    node_class = jax.random.randint(k_cls, (num_nodes,), 0, 3, jnp.int32)

    # edge_index with no self-edges (avoid r == 0)
    src_index = jax.random.randint(k_src, (num_edges,), 0, num_nodes, jnp.int32)
    offset = jax.random.randint(k_off, (num_edges,), 1, num_nodes, jnp.int32)
    trg_index = (src_index + offset) % num_nodes

    out = radial_basis_class_edge_encoding(
        pos, node_class, src_index, trg_index,
        num_basis=num_basis, r_max=r_max, p=p)
    out = jax.block_until_ready(out)

    ref = _reference(pos, node_class, src_index, trg_index, num_basis, r_max, p)
    assert out.shape == (num_edges, num_basis + 1)
    assert jnp.allclose(out, ref, atol=1e-5, rtol=1e-5), "mismatch vs reference"

    print("KERNEL_OK")
</pallas_src>

<mosaic_0001>
module attributes {stable_mosaic.version = 11 : i64} {
  func.func @_edge_encoding_kernel(%arg0: i32, %arg1: memref<4x8x128xf32, #tpu.memory_space<vmem>>, %arg2: memref<4x8x128xf32, #tpu.memory_space<vmem>>, %arg3: memref<9x8x128xf32, #tpu.memory_space<vmem>>) attributes {dimension_semantics = [#tpu.dimension_semantics<parallel>], iteration_bounds = array<i64: 1>, scalar_prefetch = 0 : i64, scratch_operands = 0 : i64, tpu.core_type = #tpu.core_type<tc>, window_params = [{transform_indices = @transform_0, window_bounds = array<i64: 4, 8, 128>}, {transform_indices = @transform_1, window_bounds = array<i64: 4, 8, 128>}, {transform_indices = @transform_2, window_bounds = array<i64: 9, 8, 128>}]} {
    %c3 = arith.constant 3 : index
    %c0 = arith.constant 0 : index
    %c0_0 = arith.constant 0 : index
    %0 = vector.load %arg1[%c3, %c0, %c0_0] : memref<4x8x128xf32, #tpu.memory_space<vmem>>, vector<1x8x128xf32>
    %1 = vector.shape_cast %0 : vector<1x8x128xf32> to vector<8x128xf32>
    %2 = tpu.bitcast %1 : vector<8x128xf32> -> vector<8x128xi32>
    %c3_1 = arith.constant 3 : index
    %c0_2 = arith.constant 0 : index
    %c0_3 = arith.constant 0 : index
    %3 = vector.load %arg2[%c3_1, %c0_2, %c0_3] : memref<4x8x128xf32, #tpu.memory_space<vmem>>, vector<1x8x128xf32>
    %4 = vector.shape_cast %3 : vector<1x8x128xf32> to vector<8x128xf32>
    %5 = tpu.bitcast %4 : vector<8x128xf32> -> vector<8x128xi32>
    %6 = arith.cmpi eq, %2, %5 : vector<8x128xi32>
    %7 = arith.extui %6 : vector<8x128xi1> to vector<8x128xi32>
    %8 = arith.sitofp %7 : vector<8x128xi32> to vector<8x128xf32>
    %c8 = arith.constant 8 : index
    %c0_4 = arith.constant 0 : index
    %c0_5 = arith.constant 0 : index
    %9 = vector.load %arg3[%c8, %c0_4, %c0_5] : memref<9x8x128xf32, #tpu.memory_space<vmem>>, vector<1x8x128xf32>
    %10 = vector.shape_cast %9 : vector<1x8x128xf32> to vector<8x128xf32>
    %11 = vector.shape_cast %8 : vector<8x128xf32> to vector<1x8x128xf32>
    tpu.vector_store %arg3[%c8, %c0_4, %c0_5], %11 {strides = array<i32>} : memref<9x8x128xf32, #tpu.memory_space<vmem>>, vector<1x8x128xf32>,
    %c0_6 = arith.constant 0 : index
    %c0_7 = arith.constant 0 : index
    %c0_8 = arith.constant 0 : index
    %12 = vector.load %arg2[%c0_6, %c0_7, %c0_8] : memref<4x8x128xf32, #tpu.memory_space<vmem>>, vector<1x8x128xf32>
    %13 = vector.shape_cast %12 : vector<1x8x128xf32> to vector<8x128xf32>
    %c0_9 = arith.constant 0 : index
    %c0_10 = arith.constant 0 : index
    %c0_11 = arith.constant 0 : index
    %14 = vector.load %arg1[%c0_9, %c0_10, %c0_11] : memref<4x8x128xf32, #tpu.memory_space<vmem>>, vector<1x8x128xf32>
    %15 = vector.shape_cast %14 : vector<1x8x128xf32> to vector<8x128xf32>
    %16 = arith.subf %13, %15 : vector<8x128xf32>
    %c1 = arith.constant 1 : index
    %c0_12 = arith.constant 0 : index
    %c0_13 = arith.constant 0 : index
    %17 = vector.load %arg2[%c1, %c0_12, %c0_13] : memref<4x8x128xf32, #tpu.memory_space<vmem>>, vector<1x8x128xf32>
    %18 = vector.shape_cast %17 : vector<1x8x128xf32> to vector<8x128xf32>
    %c1_14 = arith.constant 1 : index
    %c0_15 = arith.constant 0 : index
    %c0_16 = arith.constant 0 : index
    %19 = vector.load %arg1[%c1_14, %c0_15, %c0_16] : memref<4x8x128xf32, #tpu.memory_space<vmem>>, vector<1x8x128xf32>
    %20 = vector.shape_cast %19 : vector<1x8x128xf32> to vector<8x128xf32>
    %21 = arith.subf %18, %20 : vector<8x128xf32>
    %c2 = arith.constant 2 : index
    %c0_17 = arith.constant 0 : index
    %c0_18 = arith.constant 0 : index
    %22 = vector.load %arg2[%c2, %c0_17, %c0_18] : memref<4x8x128xf32, #tpu.memory_space<vmem>>, vector<1x8x128xf32>
    %23 = vector.shape_cast %22 : vector<1x8x128xf32> to vector<8x128xf32>
    %c2_19 = arith.constant 2 : index
    %c0_20 = arith.constant 0 : index
    %c0_21 = arith.constant 0 : index
    %24 = vector.load %arg1[%c2_19, %c0_20, %c0_21] : memref<4x8x128xf32, #tpu.memory_space<vmem>>, vector<1x8x128xf32>
    %25 = vector.shape_cast %24 : vector<1x8x128xf32> to vector<8x128xf32>
    %26 = arith.subf %23, %25 : vector<8x128xf32>
    %27 = arith.mulf %16, %16 : vector<8x128xf32>
    %28 = arith.mulf %21, %21 : vector<8x128xf32>
    %29 = arith.addf %27, %28 : vector<8x128xf32>
    %30 = arith.mulf %26, %26 : vector<8x128xf32>
    %31 = arith.addf %29, %30 : vector<8x128xf32>
    %cst = arith.constant 1.000000e-24 : f32
    %32 = vector.broadcast %cst : f32 to vector<8x128xf32>
    %33 = arith.maximumf %31, %32 : vector<8x128xf32>
    %34 = math.rsqrt %33 : vector<8x128xf32>
    %35 = arith.mulf %31, %34 : vector<8x128xf32>
    %cst_22 = arith.constant 2.500000e-01 : f32
    %36 = vector.broadcast %cst_22 : f32 to vector<8x128xf32>
    %37 = arith.mulf %35, %36 : vector<8x128xf32>
    %38 = arith.mulf %37, %37 : vector<8x128xf32>
    %39 = arith.mulf %38, %38 : vector<8x128xf32>
    %40 = arith.mulf %38, %39 : vector<8x128xf32>
    %cst_23 = arith.constant 2.100000e+01 : f32
    %41 = vector.broadcast %cst_23 : f32 to vector<8x128xf32>
    %42 = arith.mulf %41, %37 : vector<8x128xf32>
    %cst_24 = arith.constant 4.800000e+01 : f32
    %43 = vector.broadcast %cst_24 : f32 to vector<8x128xf32>
    %44 = arith.subf %43, %42 : vector<8x128xf32>
    %45 = arith.mulf %37, %44 : vector<8x128xf32>
    %cst_25 = arith.constant 2.800000e+01 : f32
    %46 = vector.broadcast %cst_25 : f32 to vector<8x128xf32>
    %47 = arith.subf %45, %46 : vector<8x128xf32>
    %48 = arith.mulf %40, %47 : vector<8x128xf32>
    %cst_26 = arith.constant 1.000000e+00 : f32
    %49 = vector.broadcast %cst_26 : f32 to vector<8x128xf32>
    %50 = arith.addf %49, %48 : vector<8x128xf32>
    %cst_27 = arith.constant 1.000000e+00 : f32
    %51 = vector.broadcast %cst_27 : f32 to vector<8x128xf32>
    %52 = arith.cmpf olt, %37, %51 : vector<8x128xf32>
    %cst_28 = arith.constant 0.000000e+00 : f32
    %53 = vector.broadcast %cst_28 : f32 to vector<8x128xf32>
    %54 = arith.select %52, %50, %53 : vector<8x128xi1>, vector<8x128xf32>
    %cst_29 = arith.constant 5.000000e-01 : f32
    %55 = vector.broadcast %cst_29 : f32 to vector<8x128xf32>
    %56 = arith.mulf %55, %34 : vector<8x128xf32>
    %57 = arith.mulf %56, %54 : vector<8x128xf32>
    %cst_30 = arith.constant 0.785398185 : f32
    %58 = vector.broadcast %cst_30 : f32 to vector<8x128xf32>
    %59 = arith.mulf %35, %58 : vector<8x128xf32>
    %60 = math.cos %59 : vector<8x128xf32>
    %cst_31 = arith.constant 2.000000e+00 : f32
    %61 = vector.broadcast %cst_31 : f32 to vector<8x128xf32>
    %62 = arith.mulf %61, %60 : vector<8x128xf32>
    %63 = math.sin %59 : vector<8x128xf32>
    %64 = arith.mulf %63, %57 : vector<8x128xf32>
    %c0_32 = arith.constant 0 : index
    %c0_33 = arith.constant 0 : index
    %c0_34 = arith.constant 0 : index
    %65 = vector.load %arg3[%c0_32, %c0_33, %c0_34] : memref<9x8x128xf32, #tpu.memory_space<vmem>>, vector<1x8x128xf32>
    %66 = vector.shape_cast %65 : vector<1x8x128xf32> to vector<8x128xf32>
    %67 = vector.shape_cast %64 : vector<8x128xf32> to vector<1x8x128xf32>
    tpu.vector_store %arg3[%c0_32, %c0_33, %c0_34], %67 {strides = array<i32>} : memref<9x8x128xf32, #tpu.memory_space<vmem>>, vector<1x8x128xf32>,
    %68 = arith.mulf %62, %64 : vector<8x128xf32>
    %c1_35 = arith.constant 1 : index
    %c0_36 = arith.constant 0 : index
    %c0_37 = arith.constant 0 : index
    %69 = vector.load %arg3[%c1_35, %c0_36, %c0_37] : memref<9x8x128xf32, #tpu.memory_space<vmem>>, vector<1x8x128xf32>
    %70 = vector.shape_cast %69 : vector<1x8x128xf32> to vector<8x128xf32>
    %71 = vector.shape_cast %68 : vector<8x128xf32> to vector<1x8x128xf32>
    tpu.vector_store %arg3[%c1_35, %c0_36, %c0_37], %71 {strides = array<i32>} : memref<9x8x128xf32, #tpu.memory_space<vmem>>, vector<1x8x128xf32>,
    %72 = arith.mulf %62, %68 : vector<8x128xf32>
    %73 = arith.subf %72, %64 : vector<8x128xf32>
    %c2_38 = arith.constant 2 : index
    %c0_39 = arith.constant 0 : index
    %c0_40 = arith.constant 0 : index
    %74 = vector.load %arg3[%c2_38, %c0_39, %c0_40] : memref<9x8x128xf32, #tpu.memory_space<vmem>>, vector<1x8x128xf32>
    %75 = vector.shape_cast %74 : vector<1x8x128xf32> to vector<8x128xf32>
    %76 = vector.shape_cast %73 : vector<8x128xf32> to vector<1x8x128xf32>
    tpu.vector_store %arg3[%c2_38, %c0_39, %c0_40], %76 {strides = array<i32>} : memref<9x8x128xf32, #tpu.memory_space<vmem>>, vector<1x8x128xf32>,
    %77 = arith.mulf %62, %73 : vector<8x128xf32>
    %78 = arith.subf %77, %68 : vector<8x128xf32>
    %c3_41 = arith.constant 3 : index
    %c0_42 = arith.constant 0 : index
    %c0_43 = arith.constant 0 : index
    %79 = vector.load %arg3[%c3_41, %c0_42, %c0_43] : memref<9x8x128xf32, #tpu.memory_space<vmem>>, vector<1x8x128xf32>
    %80 = vector.shape_cast %79 : vector<1x8x128xf32> to vector<8x128xf32>
    %81 = vector.shape_cast %78 : vector<8x128xf32> to vector<1x8x128xf32>
    tpu.vector_store %arg3[%c3_41, %c0_42, %c0_43], %81 {strides = array<i32>} : memref<9x8x128xf32, #tpu.memory_space<vmem>>, vector<1x8x128xf32>,
    %82 = arith.mulf %62, %78 : vector<8x128xf32>
    %83 = arith.subf %82, %73 : vector<8x128xf32>
    %c4 = arith.constant 4 : index
    %c0_44 = arith.constant 0 : index
    %c0_45 = arith.constant 0 : index
    %84 = vector.load %arg3[%c4, %c0_44, %c0_45] : memref<9x8x128xf32, #tpu.memory_space<vmem>>, vector<1x8x128xf32>
    %85 = vector.shape_cast %84 : vector<1x8x128xf32> to vector<8x128xf32>
    %86 = vector.shape_cast %83 : vector<8x128xf32> to vector<1x8x128xf32>
    tpu.vector_store %arg3[%c4, %c0_44, %c0_45], %86 {strides = array<i32>} : memref<9x8x128xf32, #tpu.memory_space<vmem>>, vector<1x8x128xf32>,
    %87 = arith.mulf %62, %83 : vector<8x128xf32>
    %88 = arith.subf %87, %78 : vector<8x128xf32>
    %c5 = arith.constant 5 : index
    %c0_46 = arith.constant 0 : index
    %c0_47 = arith.constant 0 : index
    %89 = vector.load %arg3[%c5, %c0_46, %c0_47] : memref<9x8x128xf32, #tpu.memory_space<vmem>>, vector<1x8x128xf32>
    %90 = vector.shape_cast %89 : vector<1x8x128xf32> to vector<8x128xf32>
    %91 = vector.shape_cast %88 : vector<8x128xf32> to vector<1x8x128xf32>
    tpu.vector_store %arg3[%c5, %c0_46, %c0_47], %91 {strides = array<i32>} : memref<9x8x128xf32, #tpu.memory_space<vmem>>, vector<1x8x128xf32>,
    %92 = arith.mulf %62, %88 : vector<8x128xf32>
    %93 = arith.subf %92, %83 : vector<8x128xf32>
    %c6 = arith.constant 6 : index
    %c0_48 = arith.constant 0 : index
    %c0_49 = arith.constant 0 : index
    %94 = vector.load %arg3[%c6, %c0_48, %c0_49] : memref<9x8x128xf32, #tpu.memory_space<vmem>>, vector<1x8x128xf32>
    %95 = vector.shape_cast %94 : vector<1x8x128xf32> to vector<8x128xf32>
    %96 = vector.shape_cast %93 : vector<8x128xf32> to vector<1x8x128xf32>
    tpu.vector_store %arg3[%c6, %c0_48, %c0_49], %96 {strides = array<i32>} : memref<9x8x128xf32, #tpu.memory_space<vmem>>, vector<1x8x128xf32>,
    %97 = arith.mulf %62, %93 : vector<8x128xf32>
    %98 = arith.subf %97, %88 : vector<8x128xf32>
    %c7 = arith.constant 7 : index
    %c0_50 = arith.constant 0 : index
    %c0_51 = arith.constant 0 : index
    %99 = vector.load %arg3[%c7, %c0_50, %c0_51] : memref<9x8x128xf32, #tpu.memory_space<vmem>>, vector<1x8x128xf32>
    %100 = vector.shape_cast %99 : vector<1x8x128xf32> to vector<8x128xf32>
    %101 = vector.shape_cast %98 : vector<8x128xf32> to vector<1x8x128xf32>
    tpu.vector_store %arg3[%c7, %c0_50, %c0_51], %101 {strides = array<i32>} : memref<9x8x128xf32, #tpu.memory_space<vmem>>, vector<1x8x128xf32>,
    return
  }
  func.func @transform_0(%arg0: i32) -> (i32, i32, i32) {
    %c0_i32 = arith.constant 0 : i32
    %c0_i32_0 = arith.constant 0 : i32
    %c0_i32_1 = arith.constant 0 : i32
    return %c0_i32, %arg0, %c0_i32_0 : i32, i32, i32
  }
  func.func @transform_1(%arg0: i32) -> (i32, i32, i32) {
    %c0_i32 = arith.constant 0 : i32
    %c0_i32_0 = arith.constant 0 : i32
    %c0_i32_1 = arith.constant 0 : i32
    return %c0_i32, %arg0, %c0_i32_0 : i32, i32, i32
  }
  func.func @transform_2(%arg0: i32) -> (i32, i32, i32) {
    %c0_i32 = arith.constant 0 : i32
    %c0_i32_0 = arith.constant 0 : i32
    %c0_i32_1 = arith.constant 0 : i32
    return %c0_i32, %arg0, %c0_i32_0 : i32, i32, i32
  }
}

</mosaic_0001>

<llo_original>
// kernel: tpu_custom_call.1
$region0: #{tpu_custom_call.1}
  #allocation0 [shape = 'u32[]', space=smem, size = 0x4, offset = 0x4, fixed_abs, tag = 'smem constant byte address 0x4 - core index']
  #allocation1 [shape = 'u32[144,128]{1,0:T(1,128)}', space=vmem, size = 0x12000, scoped, tag = 'internal scratch']
  %s0 = inlined_call_operand.hbm [shape: f32[4,8,128], index: 0, kind: input, shape index: {}]
  %s1 = inlined_call_operand.hbm [shape: f32[4,8,128], index: 1, kind: input, shape index: {}]
  %s2 = inlined_call_operand.hbm [shape: f32[9,8,128], index: 2, kind: output, shape index: {}]
  %s3 = sld [smem:[#allocation0]]
  $region26: #{tpu_custom_call.1} parent=0
    _
  %s5 = ssub.s32 1, %s3
  %s6 = scalar_select 0, %s5, %s3
  $region1: #{tpu_custom_call.1} parent=0
    #allocation2 [shape = 'u8[16384]{0}', space=vmem, size = 0x4000, scoped, tag = 'input window, operand 0, single buffered']
    #allocation3 [shape = 's32[1]{0}', space=sflag, size = 0x4, scoped, tag = 'scoped memory for tpu_custom_call.1']
    #allocation4 [shape = 's32[1]{0}', space=sflag, size = 0x4, scoped, tag = 'scoped memory for tpu_custom_call.1']
    #allocation5 [shape = 'u8[16384]{0}', space=vmem, size = 0x4000, scoped, tag = 'input window, operand 1, single buffered']
    #allocation6 [shape = 's32[1]{0}', space=sflag, size = 0x4, scoped, tag = 'scoped memory for tpu_custom_call.1']
    #allocation7 [shape = 'u8[36864]{0}', space=vmem, size = 0x9000, scoped, tag = 'output window, operand 0, single buffered']
    %7 = vsyncpa [#allocation3], 0
    %8 = vsyncpa [#allocation6], 0
    %9 = vsyncpa [#allocation4], 0
    // Predicated region
    $region2: #{tpu_custom_call.1} parent=1 // pred_check
      _
    $region3: #{tpu_custom_call.1} parent=1 // pred_check_branch
      %11 = sbr.rel (0) target = $region5
    $region4: #{tpu_custom_call.1} parent=1 // pred_region
      %s13 = ssub.s32 512, 512
      %14 = vsyncadd [#allocation3], %s13
      %s15 = sshll.u32 [#allocation2], 4
      %s16 = int_to_ptr.vmem [resolvable:$true] %s15
      %21 = dma.hbm_to_vmem [thread:$0]  %s0, 512, %s16, [#allocation3], 128, 128, 8
    $region5: #{tpu_custom_call.1} parent=1 // pred_fallthru
      _
    // Predicated region
    $region6: #{tpu_custom_call.1} parent=1 // pred_check
      _
    $region7: #{tpu_custom_call.1} parent=1 // pred_check_branch
      %23 = sbr.rel (0) target = $region9
    $region8: #{tpu_custom_call.1} parent=1 // pred_region
      %s25 = ssub.s32 512, 512
      %26 = vsyncadd [#allocation6], %s25
      %s27 = sshll.u32 [#allocation5], 4
      %s28 = int_to_ptr.vmem [resolvable:$true] %s27
      %33 = dma.hbm_to_vmem [thread:$0]  %s1, 512, %s28, [#allocation6], 128, 128, 8
    $region9: #{tpu_custom_call.1} parent=1 // pred_fallthru
      _
    // Predicated region
    $region10: #{tpu_custom_call.1} parent=1 // pred_check
      _
    $region11: #{tpu_custom_call.1} parent=1 // pred_check_branch
      %35 = sbr.rel (0) target = $region13
    $region12: #{tpu_custom_call.1} parent=1 // pred_region
      %36 = dma.done [#allocation3], 512
    $region13: #{tpu_custom_call.1} parent=1 // pred_fallthru
      _
    // Predicated region
    $region14: #{tpu_custom_call.1} parent=1 // pred_check
      _
    $region15: #{tpu_custom_call.1} parent=1 // pred_check_branch
      %38 = sbr.rel (0) target = $region17
    $region16: #{tpu_custom_call.1} parent=1 // pred_region
      %39 = dma.done [#allocation6], 512
    $region17: #{tpu_custom_call.1} parent=1 // pred_fallthru
      _
    %s40 = scalar_lea.vmem [#allocation2], 24
    %v41 = vld [vmem:[%s40] sm:$0xff]
    %s43 = scalar_lea.vmem [#allocation5], 24
    %v44 = vld [vmem:[%s43] sm:$0xff]
    %vm46 = vcmp.eq.s32.totalorder %v41, %v44
    %v47 = vsel %vm46, 1, 0
    %v48 = vcvt.s32.f32 %v47
    %s49 = scalar_lea.vmem [#allocation7], 64
    %50 = vst [vmem:[%s49] sm:$0xff] %v48
    %v51 = vld [vmem:[#allocation5] sm:$0xff]
    %v52 = vld [vmem:[#allocation2] sm:$0xff]
    %v53 = vsub.f32 %v51, %v52
    %s54 = scalar_lea.vmem [#allocation5], 8
    %v55 = vld [vmem:[%s54] sm:$0xff]
    %s56 = scalar_lea.vmem [#allocation2], 8
    %v57 = vld [vmem:[%s56] sm:$0xff]
    %v58 = vsub.f32 %v55, %v57
    %s59 = scalar_lea.vmem [#allocation5], 16
    %v60 = vld [vmem:[%s59] sm:$0xff]
    %s61 = scalar_lea.vmem [#allocation2], 16
    %v62 = vld [vmem:[%s61] sm:$0xff]
    %v63 = vsub.f32 %v60, %v62
    %v64 = vmul.f32 %v53, %v53
    %v65 = vmul.f32 %v58, %v58
    %v66 = vadd.f32 %v64, %v65
    %v67 = vmul.f32 %v63, %v63
    %v68 = vadd.f32 %v66, %v67
    %v69 = vmax.f32 %v68, 1e-24
    %v70 = vrsqrt.pop %v69
    %v71 = vmul.f32 %v68, %v70
    %v72 = vmul.f32 %v71, 0.25
    %v73 = vmul.f32 %v72, %v72
    %v74 = vmul.f32 %v73, %v73
    %v75 = vmul.f32 %v73, %v74
    %v76 = vmul.f32 %v72, 21.0
    %v77 = vsub.f32 48.0, %v76
    %v78 = vmul.f32 %v72, %v77
    %v79 = vsub.f32 %v78, 28.0
    %v80 = vmul.f32 %v75, %v79
    %v81 = vadd.f32 %v80, 1.0
    %vm82 = vcmp.lt.f32.partialorder %v72, 1.0
    %v83 = vsel %vm82, %v81, 0.0
    %v84 = vmul.f32 %v70, 0.5
    %v85 = vmul.f32 %v84, %v83
    %v86 = vmul.f32 %v71, 0.7853982
    %v87 = vand.u32 2147483647, %v86
    %vm88 = vcmp.le.f32.partialorder %v87, 0.7853982
    %vm89 = vcmp.lt.s32.totalorder %v86, 0
    %v90 = vand.u32 %v86, 2139095040
    %v91 = vshrl.u32 %v90, 23
    %v92 = vsub.s32 %v91, 127
    %v93 = vand.u32 2147483647, %v86
    %v94 = vand.u32 %v93, 8388607
    %v95 = vor.u32 %v94, 8388608
    %v96 = vsub.s32 0, %v95
    %v97 = vadd.s32 %v92, 1
    %vm98 = vcmp.gt.s32.totalorder %v97, 0
    %v99 = vsel %vm98, %v97, 0
    %v100 = vshrl.u32 %v99, 5
    %v101 = vand.u32 %v99, 31
    %v102 = vsub.s32 32, %v101
    %v103 = vshrl.u32 683565275, %v102
    %v104 = vshll.u32 683565275, %v101
    %v105 = vshrl.u32 2475754826, %v102
    %v106 = vor.u32 %v104, %v105
    %v107 = vshll.u32 2475754826, %v101
    %v108 = vshrl.u32 2131351028, %v102
    %v109 = vor.u32 %v107, %v108
    %v110 = vshll.u32 2131351028, %v101
    %v111 = vshrl.u32 2102212464, %v102
    %v112 = vor.u32 %v110, %v111
    %v113 = vshll.u32 2102212464, %v101
    %v114 = vshrl.u32 920167782, %v102
    %v115 = vor.u32 %v113, %v114
    %v116 = vshll.u32 920167782, %v101
    %v117 = vshrl.u32 1326507024, %v102
    %v118 = vor.u32 %v116, %v117
    %vm119 = vcmp.lt.s32.totalorder %v100, 1
    %vm120 = vcmp.lt.s32.totalorder %v100, 2
    %vm121 = vcmp.lt.s32.totalorder %v100, 3
    %vm122 = vcmp.lt.s32.totalorder %v100, 4
    %v123 = vsel %vm119, %v103, %v106
    %v124 = vsel %vm122, %v112, 2102212464
    %v125 = vsel %vm121, %v109, %v124
    %v126 = vsel %vm120, %v123, %v125
    %v127 = vsel %vm119, %v106, %v109
    %v128 = vsel %vm122, %v115, 920167782
    %v129 = vsel %vm121, %v112, %v128
    %v130 = vsel %vm120, %v127, %v129
    %v131 = vsel %vm119, %v109, %v112
    %v132 = vsel %vm122, %v118, 1326507024
    %v133 = vsel %vm121, %v115, %v132
    %v134 = vsel %vm120, %v131, %v133
    %v135 = vshll.u32 %v95, 8
    %v136 = vmul.u32.u64.compose %v135, %v134
    %v137 = vextract.low.u32 %v136
    %v138 = vextract.high.u32 %v136
    %v139 = vmul.u32.u64.compose %v135, %v130
    %v140 = vextract.low.u32 %v139
    %v141 = vextract.high.u32 %v139
    %v142 = vmul.u32 %v135, %v126
    %v143 = vadd.s32 %v138, %v140
    %vm144 = vc.u32 %v138, %v140
    %v145 = vadd.s32 %v141, 1
    %v146 = vsel %vm144, %v145, %v141
    %v147 = vadd.s32 %v142, %v146
    %v148 = vadd.s32 %v147, 536870912
    %v149 = vshrl.u32 %v148, 30
    %v150 = vshll.u32 %v149, 30
    %v151 = vsub.s32 %v147, %v150
    %vm152 = vcmp.lt.s32.totalorder %v151, 0
    %v153 = vsub.s32 0, %v151
    %v154 = vsel %vm152, %v153, %v151
    %v155 = vclz %v154
    %v156 = vsub.s32 %v155, 2
    %vm157 = vcmp.gt.s32.totalorder 0, %v156
    %v158 = vsel %vm157, 0, %v156
    %v159 = vsub.s32 32, %v158
    %v160 = vshll.u32 %v151, %v158
    %v161 = vshrl.u32 %v143, %v159
    %v162 = vor.u32 %v160, %v161
    %v163 = vsub.s32 4294967266, %v158
    %v164 = vadd.s32 %v163, 127
    %v165 = vshll.u32 %v164, 23
    %v166 = vor.u32 4788187, %v165
    %v167 = vand.u32 2147483647, %v166
    %v169 = vcvt.s32.f32 %v162
    %v170 = vmul.f32 %v169, %v167
    %v171 = vxor.u32 %v170, 2147483648
    %v172 = vsel %vm89, %v171, %v170
    %v173 = vsub.s32 4, %v149
    %v174 = vsel %vm89, %v173, %v149
    %v175 = vsel %vm88, %v86, %v172
    %v176 = vsel %vm88, 0, %v174
    %v177 = vcosq.f32.pop %v175
    %v178 = vsinq.f32.pop %v175
    %vm179 = vweird.f32 %v86
    %v180 = vand.u32 %v176, 3
    %vm181 = vcmp.lt.s32.totalorder %v180, 2
    %vm182 = vcmp.eq.s32.totalorder %v180, 0
    %v183 = vxor.u32 %v178, 2147483648
    %v184 = vsel %vm182, %v177, %v183
    %vm185 = vcmp.eq.s32.totalorder %v180, 2
    %v186 = vxor.u32 %v177, 2147483648
    %v187 = vsel %vm185, %v186, %v178
    %v188 = vsel %vm181, %v184, %v187
    %v189 = vsel %vm179, nan, %v188
    %v190 = vmul.f32 %v189, 2.0
    %v191 = vand.u32 2147483647, %v86
    %vm192 = vcmp.le.f32.partialorder %v191, 0.7853982
    %vm193 = vcmp.lt.s32.totalorder %v86, 0
    %v194 = vand.u32 %v86, 2139095040
    %v195 = vshrl.u32 %v194, 23
    %v196 = vsub.s32 %v195, 127
    %v197 = vand.u32 2147483647, %v86
    %v198 = vand.u32 %v197, 8388607
    %v199 = vor.u32 %v198, 8388608
    %v200 = vsub.s32 0, %v199
    %v201 = vadd.s32 %v196, 1
    %vm202 = vcmp.gt.s32.totalorder %v201, 0
    %v203 = vsel %vm202, %v201, 0
    %v204 = vshrl.u32 %v203, 5
    %v205 = vand.u32 %v203, 31
    %v206 = vsub.s32 32, %v205
    %v207 = vshrl.u32 683565275, %v206
    %v208 = vshll.u32 683565275, %v205
    %v209 = vshrl.u32 2475754826, %v206
    %v210 = vor.u32 %v208, %v209
    %v211 = vshll.u32 2475754826, %v205
    %v212 = vshrl.u32 2131351028, %v206
    %v213 = vor.u32 %v211, %v212
    %v214 = vshll.u32 2131351028, %v205
    %v215 = vshrl.u32 2102212464, %v206
    %v216 = vor.u32 %v214, %v215
    %v217 = vshll.u32 2102212464, %v205
    %v218 = vshrl.u32 920167782, %v206
    %v219 = vor.u32 %v217, %v218
    %v220 = vshll.u32 920167782, %v205
    %v221 = vshrl.u32 1326507024, %v206
    %v222 = vor.u32 %v220, %v221
    %vm223 = vcmp.lt.s32.totalorder %v204, 1
    %vm224 = vcmp.lt.s32.totalorder %v204, 2
    %vm225 = vcmp.lt.s32.totalorder %v204, 3
    %vm226 = vcmp.lt.s32.totalorder %v204, 4
    %v227 = vsel %vm223, %v207, %v210
    %v228 = vsel %vm226, %v216, 2102212464
    %v229 = vsel %vm225, %v213, %v228
    %v230 = vsel %vm224, %v227, %v229
    %v231 = vsel %vm223, %v210, %v213
    %v232 = vsel %vm226, %v219, 920167782
    %v233 = vsel %vm225, %v216, %v232
    %v234 = vsel %vm224, %v231, %v233
    %v235 = vsel %vm223, %v213, %v216
    %v236 = vsel %vm226, %v222, 1326507024
    %v237 = vsel %vm225, %v219, %v236
    %v238 = vsel %vm224, %v235, %v237
    %v239 = vshll.u32 %v199, 8
    %v240 = vmul.u32.u64.compose %v239, %v238
    %v241 = vextract.low.u32 %v240
    %v242 = vextract.high.u32 %v240
    %v243 = vmul.u32.u64.compose %v239, %v234
    %v244 = vextract.low.u32 %v243
    %v245 = vextract.high.u32 %v243
    %v246 = vmul.u32 %v239, %v230
    %v247 = vadd.s32 %v242, %v244
    %vm248 = vc.u32 %v242, %v244
    %v249 = vadd.s32 %v245, 1
    %v250 = vsel %vm248, %v249, %v245
    %v251 = vadd.s32 %v246, %v250
    %v252 = vadd.s32 %v251, 536870912
    %v253 = vshrl.u32 %v252, 30
    %v254 = vshll.u32 %v253, 30
    %v255 = vsub.s32 %v251, %v254
    %vm256 = vcmp.lt.s32.totalorder %v255, 0
    %v257 = vsub.s32 0, %v255
    %v258 = vsel %vm256, %v257, %v255
    %v259 = vclz %v258
    %v260 = vsub.s32 %v259, 2
    %vm261 = vcmp.gt.s32.totalorder 0, %v260
    %v262 = vsel %vm261, 0, %v260
    %v263 = vsub.s32 32, %v262
    %v264 = vshll.u32 %v255, %v262
    %v265 = vshrl.u32 %v247, %v263
    %v266 = vor.u32 %v264, %v265
    %v267 = vsub.s32 4294967266, %v262
    %v268 = vadd.s32 %v267, 127
    %v269 = vshll.u32 %v268, 23
    %v270 = vor.u32 4788187, %v269
    %v271 = vand.u32 2147483647, %v270
    %v273 = vcvt.s32.f32 %v266
    %v274 = vmul.f32 %v273, %v271
    %v275 = vxor.u32 %v274, 2147483648
    %v276 = vsel %vm193, %v275, %v274
    %v277 = vsub.s32 4, %v253
    %v278 = vsel %vm193, %v277, %v253
    %v279 = vsel %vm192, %v86, %v276
    %v280 = vsel %vm192, 0, %v278
    %v281 = vcosq.f32.pop %v279
    %v282 = vsinq.f32.pop %v279
    %vm283 = vweird.f32 %v86
    %v284 = vadd.s32 %v280, 3
    %v285 = vand.u32 %v284, 3
    %vm286 = vcmp.lt.s32.totalorder %v285, 2
    %vm287 = vcmp.eq.s32.totalorder %v285, 0
    %v288 = vxor.u32 %v282, 2147483648
    %v289 = vsel %vm287, %v281, %v288
    %vm290 = vcmp.eq.s32.totalorder %v285, 2
    %v291 = vxor.u32 %v281, 2147483648
    %v292 = vsel %vm290, %v291, %v282
    %v293 = vsel %vm286, %v289, %v292
    %v294 = vsel %vm283, nan, %v293
    %v295 = vmul.f32 %v294, %v85
    %296 = vst [vmem:[#allocation7] sm:$0xff] %v295
    %v297 = vmul.f32 %v190, %v295
    %s298 = scalar_lea.vmem [#allocation7], 8
    %299 = vst [vmem:[%s298] sm:$0xff] %v297
    %v300 = vmul.f32 %v190, %v297
    %v301 = vsub.f32 %v300, %v295
    %s302 = scalar_lea.vmem [#allocation7], 16
    %303 = vst [vmem:[%s302] sm:$0xff] %v301
    %v304 = vmul.f32 %v190, %v301
    %v305 = vsub.f32 %v304, %v297
    %s306 = scalar_lea.vmem [#allocation7], 24
    %307 = vst [vmem:[%s306] sm:$0xff] %v305
    %v308 = vmul.f32 %v190, %v305
    %v309 = vsub.f32 %v308, %v301
    %s310 = scalar_lea.vmem [#allocation7], 32
    %311 = vst [vmem:[%s310] sm:$0xff] %v309
    %v312 = vmul.f32 %v190, %v309
    %v313 = vsub.f32 %v312, %v305
    %s314 = scalar_lea.vmem [#allocation7], 40
    %315 = vst [vmem:[%s314] sm:$0xff] %v313
    %v316 = vmul.f32 %v190, %v313
    %v317 = vsub.f32 %v316, %v309
    %s318 = scalar_lea.vmem [#allocation7], 48
    %319 = vst [vmem:[%s318] sm:$0xff] %v317
    %v320 = vmul.f32 %v190, %v317
    %v321 = vsub.f32 %v320, %v313
    %s322 = scalar_lea.vmem [#allocation7], 56
    %323 = vst [vmem:[%s322] sm:$0xff] %v321
    // Predicated region
    $region18: #{tpu_custom_call.1} parent=1 // pred_check
      _
    $region19: #{tpu_custom_call.1} parent=1 // pred_check_branch
      %325 = sbr.rel (0) target = $region21
    $region20: #{tpu_custom_call.1} parent=1 // pred_region
      %s327 = ssub.s32 1152, 1152
      %328 = vsyncadd [#allocation4], %s327
      %s329 = sshll.u32 [#allocation7], 4
      %s330 = int_to_ptr.vmem [resolvable:$true] %s329
      %335 = dma.vmem_to_hbm [thread:$0]  %s330, 1152, %s2, [#allocation4], 128, 128, 8
    $region21: #{tpu_custom_call.1} parent=1 // pred_fallthru
      _
    // Predicated region
    $region22: #{tpu_custom_call.1} parent=1 // pred_check
      _
    $region23: #{tpu_custom_call.1} parent=1 // pred_check_branch
      %337 = sbr.rel (0) target = $region25
    $region24: #{tpu_custom_call.1} parent=1 // pred_region
      %338 = dma.done [#allocation4], 1152
    $region25: #{tpu_custom_call.1} parent=1 // pred_fallthru
      _
    %339 = vsyncpa [#allocation3], 1
    %340 = vsyncpa [#allocation6], 1
    %341 = vsyncpa [#allocation4], 1

</llo_original>
